<compile_context>
chip_gen: v5e
topology: v5e:2x2
jax: 0.10.0
libtpu: 0.0.40
codegen_flags: <defaults>
</compile_context>

<pallas_src>
import numpy as np
import jax
import jax.numpy as jnp
from jax.experimental import pallas as pl
from jax.experimental.pallas import tpu as pltpu


def make_nrt_kernel(depth, num_leaves):
    L = num_leaves

    def kernel(x_ref, wT_ref, b_ref, MT_ref, bits_ref, piT_ref, outT_ref):
        # z^T = W_fold^T @ x^T, computed as (L, F) . (TB, F)^T -> (L, TB) so the
        # batch tile stays on lanes (Mosaic stages the x-operand transpose).
        z = jax.lax.dot_general(
            wT_ref[...], x_ref[...],
            dimension_numbers=(((1,), (1,)), ((), ())),
            preferred_element_type=jnp.float32) + b_ref[...]              # (L, TB)
        d = jax.nn.sigmoid(z)                                             # (L, TB), EUP
        # Single fused routing matmul for all `depth` levels:
        #   fac[k*L + l, b] = d[anc(l,k), b]  (left)  or  1 - d[anc(l,k), b] (right)
        fac = jnp.dot(MT_ref[...], d,
                      preferred_element_type=jnp.float32) + bits_ref[...]  # (depth*L, TB)
        mu = fac[0:L, :]                       # start product at level 0 (no ones())
        for k in range(1, depth):
            mu = mu * fac[k * L:(k + 1) * L, :]
        # NOTE: keep everything batch-column independent — the final ragged tile
        # may contain garbage pad columns that are dropped on the clipped store.
        # TODO(synk): nn.Dropout treated as eval-mode identity (no in-kernel PRNG masking).
        outT_ref[...] = jnp.dot(piT_ref[...], mu,
                                preferred_element_type=jnp.float32)        # (C, TB)

    return kernel


def build_tree_routing_T(depth):
    """Static routing matrices (transposed layout) encoding the mu-tiling loop.

    Row k*L + l of MT has a single +/-1 entry at the heap-ordered ancestor of
    leaf l at level k; bits holds 0 (left -> d) or 1 (right -> 1-d).
    """
    L = 2 ** depth
    MT = np.zeros((depth * L, L), dtype=np.float32)
    bits = np.zeros((depth * L, 1), dtype=np.float32)
    for k in range(depth):
        for l in range(L):
            node = (1 << k) + (l >> (depth - k))       # ancestor node, root = 1
            b = (l >> (depth - 1 - k)) & 1             # 0 = left, 1 = right
            MT[k * L + l, node] = 1.0 - 2.0 * b
            bits[k * L + l, 0] = float(b)
    return jnp.asarray(MT), jnp.asarray(bits)


def neural_regression_tree(features, used_features_mask, w1_weight, b1, pi, depth,
                           tile_b=16384, input_dtype=jnp.float32,
                           vmem_limit_bytes=None):
    """Forward pass matching NeuralRegressionTree.forward (eval-mode dropout).

    features:            (B, F) float32
    used_features_mask:  (U, F) one-hot rows (module's self.used_features_mask)
    w1_weight, b1:       nn.Linear(U, L) params, shapes (L, U) and (L,)
    pi:                  (L, C)
    input_dtype:         jnp.float32 (exact parity) or jnp.bfloat16 (halves the
                         dominant HBM read; ~1e-3 deviation).

    Returns logits in lane-dense (num_classes, batch) layout; take `.T` for the
    module's (batch, num_classes).
    """
    features = jnp.asarray(features, jnp.float32)
    B, F = features.shape
    L = 2 ** depth
    C = pi.shape[-1]

    # ---- host-side fusion (tiny JAX ops, once per call) ----
    # 1) fold the one-hot feature selection into the decision weights (exact):
    #    x @ mask^T @ W1^T == x @ (mask^T @ W1^T)
    w_eff = jnp.asarray(used_features_mask, jnp.float32).T @ \
            jnp.asarray(w1_weight, jnp.float32).T                        # (F, L)
    # 2) hoist the cross-batch norm scale out of the kernel and fold it into W:
    #    (s * x) @ W == x @ (s[:, None] * W)   -> kernel is row-independent.
    #    NOTE: matches PyTorch exactly — no epsilon, an all-zero feature column
    #    divides by zero just like the original module.
    norm = jnp.linalg.norm(features, axis=0)                             # (F,)
    scale = 1.0 - (B - 2) / (norm ** 2)
    wT = (scale[:, None] * w_eff).T                                      # (L, F)
    bias = jnp.asarray(b1, jnp.float32).reshape(L, 1)
    piT = jnp.asarray(pi, jnp.float32).T                                 # (C, L)
    MT, bits = build_tree_routing_T(depth)                               # (depth*L, L), (depth*L, 1)

    # Optional bf16 HBM/MXU path for the dominant operands (f32 accumulation).
    x_k = features.astype(input_dtype)
    wT_k = wT.astype(input_dtype)

    # Only tiny batches (< one 128-lane tile) get padded; otherwise the natural
    # (B, F) array is fed directly and Pallas clips the ragged final tile.
    B_k = B
    if B < 128:
        B_k = 128
        x_k = jnp.pad(x_k, ((0, B_k - B), (0, 0)))

    # ---- batch tiling: big tiles (DMA-dominated grid steps); prefer an even
    # grid >= 2 so ("parallel",) can shard across v7x's two TensorCores. ----
    blocks = pl.cdiv(B_k, 128)                        # batch in 128-lane chunks
    tile_blocks = max(1, min(int(tile_b) // 128, blocks))
    n_tiles = pl.cdiv(blocks, tile_blocks)
    if blocks >= 2 and (n_tiles % 2 == 1):            # odd (incl. 1) -> try even
        tile_blocks = pl.cdiv(blocks, n_tiles + 1)
        n_tiles = pl.cdiv(blocks, tile_blocks)
    tile_b = 128 * tile_blocks                         # guaranteed <= B_k

    const = lambda i: (0, 0)
    cost = pl.CostEstimate(
        flops=int(B * (2 * L * F + 2 * depth * L * L + (depth - 1) * L + 2 * C * L)),
        transcendentals=int(B * L),
        bytes_accessed=int(B * F * jnp.dtype(input_dtype).itemsize + B * C * 4))

    outT = pl.pallas_call(
        make_nrt_kernel(depth, L),
        out_shape=jax.ShapeDtypeStruct((C, B_k), jnp.float32),
        grid_spec=pltpu.PrefetchScalarGridSpec(
            num_scalar_prefetch=0,
            grid=(n_tiles,),
            in_specs=[
                pl.BlockSpec((tile_b, F), lambda i: (i, 0)),   # x batch tile, natural layout
                pl.BlockSpec((L, F), const),                   # fused decision weights (resident)
                pl.BlockSpec((L, 1), const),                   # bias
                pl.BlockSpec((depth * L, L), const),           # fused routing matrix
                pl.BlockSpec((depth * L, 1), const),           # routing bit offsets
                pl.BlockSpec((C, L), const),                   # pi^T
            ],
            out_specs=pl.BlockSpec((C, tile_b), lambda i: (0, i)),
        ),
        compiler_params=pltpu.CompilerParams(
            dimension_semantics=("parallel",),
            vmem_limit_bytes=None if vmem_limit_bytes is None else int(vmem_limit_bytes)),
        cost_estimate=cost,
    )(x_k, wT_k, bias, MT, bits, piT)
    return outT[:, :B] if B_k != B else outT


def reference_forward(features, used_features_mask, w1_weight, b1, pi, depth):
    """Pure-JAX transcription of the PyTorch forward (eval-mode dropout)."""
    B = features.shape[0]
    L = 2 ** depth
    norm = jnp.linalg.norm(features, axis=0)
    f = (1.0 - (B - 2) / norm ** 2) * features
    feat = f @ used_features_mask.T
    d = jax.nn.sigmoid(feat @ w1_weight.T + b1[None, :])                 # (B, L)
    decisions = jnp.stack([d, 1.0 - d], axis=2)                          # (B, L, 2)
    mu = jnp.ones((B, 1, 1), dtype=jnp.float32)
    begin, end = 1, 2
    for level in range(depth):
        mu = mu.reshape(B, -1, 1)
        mu = jnp.tile(mu, (1, 1, 2))
        mu = mu * decisions[:, begin:end, :]
        begin = end
        end = begin + 2 ** (level + 1)
    mu = mu.reshape(B, L)
    return mu @ pi


if __name__ == "__main__":
    # Small shapes consistent with the module.
    depth = 3
    num_features = 16
    used_features_rate = 0.5
    num_classes = 4

    num_leaves = 2 ** depth
    num_used = int(num_features * used_features_rate)

    # Deterministic parameter init (synthetic; mirrors the __init__ shapes).
    rng_np = np.random.default_rng(0)
    sampled_idx = rng_np.permutation(num_features)[:num_used]
    used_mask = jnp.asarray(np.eye(num_features, dtype=np.float32)[sampled_idx])  # (U, F)

    key = jax.random.PRNGKey(0)
    k_x1, k_x2, k_x3, k_w, k_b, k_pi = jax.random.split(key, 6)
    bound = 1.0 / np.sqrt(num_used)
    # nn.Linear(num_used, num_leaves): weight (L, U), bias (L,)
    w1 = jax.random.uniform(k_w, (num_leaves, num_used), jnp.float32, -bound, bound)
    b1 = jax.random.uniform(k_b, (num_leaves,), jnp.float32, -bound, bound)
    pi = 0.5 * jax.random.normal(k_pi, (num_leaves, num_classes), dtype=jnp.float32)

    # Test 1: tiny batch (single tile; only this sub-128 case pads the input).
    x_small = jax.random.normal(k_x1, (8, num_features), dtype=jnp.float32)
    out = jax.block_until_ready(
        neural_regression_tree(x_small, used_mask, w1, b1, pi, depth))
    ref = reference_forward(x_small, used_mask, w1, b1, pi, depth)
    np.testing.assert_allclose(np.asarray(out).T, np.asarray(ref), rtol=1e-4, atol=1e-5)

    # Test 2: multi-tile ragged batch (grid of 3, last tile partially out of range).
    x_big = jax.random.normal(k_x2, (300, num_features), dtype=jnp.float32)
    out2 = jax.block_until_ready(
        neural_regression_tree(x_big, used_mask, w1, b1, pi, depth, tile_b=128))
    ref2 = reference_forward(x_big, used_mask, w1, b1, pi, depth)
    np.testing.assert_allclose(np.asarray(out2).T, np.asarray(ref2), rtol=1e-4, atol=1e-5)

    # Test 3: default big-tile heuristic (even grid of 2, ragged final tile, no pad).
    x_med = jax.random.normal(k_x3, (1000, num_features), dtype=jnp.float32)
    out3 = jax.block_until_ready(
        neural_regression_tree(x_med, used_mask, w1, b1, pi, depth))
    ref3 = reference_forward(x_med, used_mask, w1, b1, pi, depth)
    np.testing.assert_allclose(np.asarray(out3).T, np.asarray(ref3), rtol=1e-4, atol=1e-5)

    # Test 4: optional bfloat16 input path (halved HBM read; looser parity).
    out4 = jax.block_until_ready(
        neural_regression_tree(x_big, used_mask, w1, b1, pi, depth,
                               input_dtype=jnp.bfloat16))
    np.testing.assert_allclose(np.asarray(out4).T, np.asarray(ref2), rtol=3e-2, atol=5e-3)

    print("KERNEL_OK")
</pallas_src>

<mosaic_0001>
module attributes {stable_mosaic.version = 11 : i64} {
  func.func @kernel(%arg0: i32, %arg1: memref<128x16xf32, #tpu.memory_space<vmem>>, %arg2: memref<8x16xf32, #tpu.memory_space<vmem>>, %arg3: memref<8x1xf32, #tpu.memory_space<vmem>>, %arg4: memref<24x8xf32, #tpu.memory_space<vmem>>, %arg5: memref<24x1xf32, #tpu.memory_space<vmem>>, %arg6: memref<4x8xf32, #tpu.memory_space<vmem>>, %arg7: memref<4x128xf32, #tpu.memory_space<vmem>>) attributes {dimension_semantics = [#tpu.dimension_semantics<parallel>], iteration_bounds = array<i64: 1>, scalar_prefetch = 0 : i64, scratch_operands = 0 : i64, tpu.core_type = #tpu.core_type<tc>, window_params = [{transform_indices = @transform_0, window_bounds = array<i64: 128, 16>}, {pipeline_mode = #tpu.pipeline_mode<synchronous>, transform_indices = @transform_1, window_bounds = array<i64: 8, 16>}, {pipeline_mode = #tpu.pipeline_mode<synchronous>, transform_indices = @transform_2, window_bounds = array<i64: 8, 1>}, {pipeline_mode = #tpu.pipeline_mode<synchronous>, transform_indices = @transform_3, window_bounds = array<i64: 24, 8>}, {pipeline_mode = #tpu.pipeline_mode<synchronous>, transform_indices = @transform_4, window_bounds = array<i64: 24, 1>}, {pipeline_mode = #tpu.pipeline_mode<synchronous>, transform_indices = @transform_5, window_bounds = array<i64: 4, 8>}, {transform_indices = @transform_6, window_bounds = array<i64: 4, 128>}]} {
    %c0 = arith.constant 0 : index
    %c0_0 = arith.constant 0 : index
    %0 = vector.load %arg2[%c0, %c0_0] : memref<8x16xf32, #tpu.memory_space<vmem>>, vector<8x16xf32>
    %c0_1 = arith.constant 0 : index
    %c0_2 = arith.constant 0 : index
    %1 = vector.load %arg1[%c0_1, %c0_2] : memref<128x16xf32, #tpu.memory_space<vmem>>, vector<128x16xf32>
    %cst = arith.constant dense<0.000000e+00> : vector<8x128xf32>
    %2 = tpu.matmul %0, %1, %cst {dimension_numbers = #tpu.dot_dimension_numbers<[1], [1], [0], [0], [0, 0, 1, 0], [], []>} : vector<8x16xf32>, vector<128x16xf32>, vector<8x128xf32> -> vector<8x128xf32>
    %c0_3 = arith.constant 0 : index
    %c0_4 = arith.constant 0 : index
    %3 = vector.load %arg3[%c0_3, %c0_4] : memref<8x1xf32, #tpu.memory_space<vmem>>, vector<8x1xf32>
    %4 = vector.broadcast %3 : vector<8x1xf32> to vector<8x128xf32>
    %5 = arith.addf %2, %4 : vector<8x128xf32>
    %6 = arith.negf %5 : vector<8x128xf32>
    %7 = math.exp %6 : vector<8x128xf32>
    %cst_5 = arith.constant 1.000000e+00 : f32
    %8 = vector.broadcast %cst_5 : f32 to vector<8x128xf32>
    %9 = arith.addf %8, %7 : vector<8x128xf32>
    %10 = arith.divf %8, %9 : vector<8x128xf32>
    %c0_6 = arith.constant 0 : index
    %c0_7 = arith.constant 0 : index
    %11 = vector.load %arg4[%c0_6, %c0_7] : memref<24x8xf32, #tpu.memory_space<vmem>>, vector<24x8xf32>
    %cst_8 = arith.constant dense<0.000000e+00> : vector<24x128xf32>
    %12 = tpu.matmul %11, %10, %cst_8 {dimension_numbers = #tpu.dot_dimension_numbers<[1], [0], [0], [1], [0, 0, 1, 1], [], []>} : vector<24x8xf32>, vector<8x128xf32>, vector<24x128xf32> -> vector<24x128xf32>
    %c0_9 = arith.constant 0 : index
    %c0_10 = arith.constant 0 : index
    %13 = vector.load %arg5[%c0_9, %c0_10] : memref<24x1xf32, #tpu.memory_space<vmem>>, vector<24x1xf32>
    %14 = vector.broadcast %13 : vector<24x1xf32> to vector<24x128xf32>
    %15 = arith.addf %12, %14 : vector<24x128xf32>
    %16 = vector.extract_strided_slice %15 {offsets = [0, 0], sizes = [8, 128], strides = [1, 1]} : vector<24x128xf32> to vector<8x128xf32>
    %17 = vector.extract_strided_slice %15 {offsets = [8, 0], sizes = [8, 128], strides = [1, 1]} : vector<24x128xf32> to vector<8x128xf32>
    %18 = arith.mulf %16, %17 : vector<8x128xf32>
    %19 = vector.extract_strided_slice %15 {offsets = [16, 0], sizes = [8, 128], strides = [1, 1]} : vector<24x128xf32> to vector<8x128xf32>
    %20 = arith.mulf %18, %19 : vector<8x128xf32>
    %c0_11 = arith.constant 0 : index
    %c0_12 = arith.constant 0 : index
    %21 = vector.load %arg6[%c0_11, %c0_12] : memref<4x8xf32, #tpu.memory_space<vmem>>, vector<4x8xf32>
    %cst_13 = arith.constant dense<0.000000e+00> : vector<4x128xf32>
    %22 = tpu.matmul %21, %20, %cst_13 {dimension_numbers = #tpu.dot_dimension_numbers<[1], [0], [0], [1], [0, 0, 1, 1], [], []>} : vector<4x8xf32>, vector<8x128xf32>, vector<4x128xf32> -> vector<4x128xf32>
    %c0_14 = arith.constant 0 : index
    %c0_15 = arith.constant 0 : index
    %23 = vector.load %arg7[%c0_14, %c0_15] : memref<4x128xf32, #tpu.memory_space<vmem>>, vector<4x128xf32>
    tpu.vector_store %arg7[%c0_14, %c0_15], %22 {strides = array<i32>} : memref<4x128xf32, #tpu.memory_space<vmem>>, vector<4x128xf32>,
    return
  }
  func.func @transform_0(%arg0: i32) -> (i32, i32) {
    %c0_i32 = arith.constant 0 : i32
    %c0_i32_0 = arith.constant 0 : i32
    return %arg0, %c0_i32 : i32, i32
  }
  func.func @transform_1(%arg0: i32) -> (i32, i32) {
    %c0_i32 = arith.constant 0 : i32
    %c0_i32_0 = arith.constant 0 : i32
    %c0_i32_1 = arith.constant 0 : i32
    return %c0_i32, %c0_i32_0 : i32, i32
  }
  func.func @transform_2(%arg0: i32) -> (i32, i32) {
    %c0_i32 = arith.constant 0 : i32
    %c0_i32_0 = arith.constant 0 : i32
    %c0_i32_1 = arith.constant 0 : i32
    return %c0_i32, %c0_i32_0 : i32, i32
  }
  func.func @transform_3(%arg0: i32) -> (i32, i32) {
    %c0_i32 = arith.constant 0 : i32
    %c0_i32_0 = arith.constant 0 : i32
    %c0_i32_1 = arith.constant 0 : i32
    return %c0_i32, %c0_i32_0 : i32, i32
  }
  func.func @transform_4(%arg0: i32) -> (i32, i32) {
    %c0_i32 = arith.constant 0 : i32
    %c0_i32_0 = arith.constant 0 : i32
    %c0_i32_1 = arith.constant 0 : i32
    return %c0_i32, %c0_i32_0 : i32, i32
  }
  func.func @transform_5(%arg0: i32) -> (i32, i32) {
    %c0_i32 = arith.constant 0 : i32
    %c0_i32_0 = arith.constant 0 : i32
    %c0_i32_1 = arith.constant 0 : i32
    return %c0_i32, %c0_i32_0 : i32, i32
  }
  func.func @transform_6(%arg0: i32) -> (i32, i32) {
    %c0_i32 = arith.constant 0 : i32
    %c0_i32_0 = arith.constant 0 : i32
    return %c0_i32, %arg0 : i32, i32
  }
}

</mosaic_0001>

<llo_original>
// kernel: tpu_custom_call.1
$region0: #{tpu_custom_call.1}
  #allocation0 [shape = 'u32[]', space=smem, size = 0x4, offset = 0x4, fixed_abs, tag = 'smem constant byte address 0x4 - core index']
  #allocation1 [shape = 'u32[72,128]{1,0:T(1,128)}', space=vmem, size = 0x9000, scoped, tag = 'internal scratch']
  %s0 = inlined_call_operand.vmem [shape: f32[128,16], index: 0, kind: input, shape index: {}]
  %s1 = inlined_call_operand.vmem [shape: f32[8,16], index: 1, kind: input, shape index: {}]
  %s2 = inlined_call_operand.vmem [shape: f32[8,1], index: 2, kind: input, shape index: {}]
  %s3 = inlined_call_operand.vmem [shape: f32[24,8], index: 3, kind: input, shape index: {}]
  %s4 = inlined_call_operand.vmem [shape: f32[24,1], index: 4, kind: input, shape index: {}]
  %s5 = inlined_call_operand.vmem [shape: f32[4,8], index: 5, kind: input, shape index: {}]
  %s6 = inlined_call_operand.hbm [shape: f32[4,128], index: 6, kind: output, shape index: {}]
  %s7 = sld [smem:[#allocation0]]
  $region34: #{tpu_custom_call.1} parent=0
    _
  %s9 = ssub.s32 1, %s7
  %s10 = scalar_select 0, %s9, %s7
  $region1: #{tpu_custom_call.1} parent=0
    #allocation2 [shape = 'u8[2048]{0}', space=vmem, size = 0x800, scoped, tag = 'output window, operand 0, single buffered']
    #allocation3 [shape = 's32[1]{0}', space=sflag, size = 0x4, scoped, tag = 'scoped memory for tpu_custom_call.1']
    %11 = vsyncpa [#allocation3], 0
    // Predicated region
    $region2: #{tpu_custom_call.1} parent=1 // pred_check
      _
    $region3: #{tpu_custom_call.1} parent=1 // pred_check_branch
      %13 = sbr.rel (0) target = $region5
    $region4: #{tpu_custom_call.1} parent=1 // pred_region
      _
    $region5: #{tpu_custom_call.1} parent=1 // pred_fallthru
      _
    // Predicated region
    $region6: #{tpu_custom_call.1} parent=1 // pred_check
      _
    $region7: #{tpu_custom_call.1} parent=1 // pred_check_branch
      %15 = sbr.rel (0) target = $region9
    $region8: #{tpu_custom_call.1} parent=1 // pred_region
      _
    $region9: #{tpu_custom_call.1} parent=1 // pred_fallthru
      _
    // Predicated region
    $region10: #{tpu_custom_call.1} parent=1 // pred_check
      _
    $region11: #{tpu_custom_call.1} parent=1 // pred_check_branch
      %17 = sbr.rel (0) target = $region13
    $region12: #{tpu_custom_call.1} parent=1 // pred_region
      _
    $region13: #{tpu_custom_call.1} parent=1 // pred_fallthru
      _
    // Predicated region
    $region14: #{tpu_custom_call.1} parent=1 // pred_check
      _
    $region15: #{tpu_custom_call.1} parent=1 // pred_check_branch
      %19 = sbr.rel (0) target = $region17
    $region16: #{tpu_custom_call.1} parent=1 // pred_region
      _
    $region17: #{tpu_custom_call.1} parent=1 // pred_fallthru
      _
    // Predicated region
    $region18: #{tpu_custom_call.1} parent=1 // pred_check
      _
    $region19: #{tpu_custom_call.1} parent=1 // pred_check_branch
      %21 = sbr.rel (0) target = $region21
    $region20: #{tpu_custom_call.1} parent=1 // pred_region
      _
    $region21: #{tpu_custom_call.1} parent=1 // pred_fallthru
      _
    // Predicated region
    $region22: #{tpu_custom_call.1} parent=1 // pred_check
      _
    $region23: #{tpu_custom_call.1} parent=1 // pred_check_branch
      %23 = sbr.rel (0) target = $region25
    $region24: #{tpu_custom_call.1} parent=1 // pred_region
      _
    $region25: #{tpu_custom_call.1} parent=1 // pred_fallthru
      _
    %v24 = vld [vmem:[%s1] sm:$0xff]
    %v25 = vld [vmem:[%s0] sm:$0xff]
    %v26 = vld [vmem:[%s0 + $0x8] sm:$0xff]
    %v27 = vld [vmem:[%s0 + $0x10] sm:$0xff]
    %v28 = vld [vmem:[%s0 + $0x18] sm:$0xff]
    %v29 = vld [vmem:[%s0 + $0x20] sm:$0xff]
    %v30 = vld [vmem:[%s0 + $0x28] sm:$0xff]
    %v31 = vld [vmem:[%s0 + $0x30] sm:$0xff]
    %v32 = vld [vmem:[%s0 + $0x38] sm:$0xff]
    %v33 = vld [vmem:[%s0 + $0x40] sm:$0xff]
    %v34 = vld [vmem:[%s0 + $0x48] sm:$0xff]
    %v35 = vld [vmem:[%s0 + $0x50] sm:$0xff]
    %v36 = vld [vmem:[%s0 + $0x58] sm:$0xff]
    %v37 = vld [vmem:[%s0 + $0x60] sm:$0xff]
    %v38 = vld [vmem:[%s0 + $0x68] sm:$0xff]
    %v39 = vld [vmem:[%s0 + $0x70] sm:$0xff]
    %v40 = vld [vmem:[%s0 + $0x78] sm:$0xff]
    %v41 = vld [vmem:[%s2] sm:$0xff]
    %43 = vset.pattern.permute.xlu0 0
    %44 = vperm.xlu0 %43, %v41
    %v45 = vpop.permute.xlu0 %44
    %vm47 = vcmask 130048
    %v49 = vsel %vm47, %v24, 0
    %v52 = vsel %vm47, %v25, 0
    %v55 = vsel %vm47, %v26, 0
    %v58 = vsel %vm47, %v27, 0
    %v61 = vsel %vm47, %v28, 0
    %v64 = vsel %vm47, %v29, 0
    %v67 = vsel %vm47, %v30, 0
    %v70 = vsel %vm47, %v31, 0
    %v73 = vsel %vm47, %v32, 0
    %v76 = vsel %vm47, %v33, 0
    %v79 = vsel %vm47, %v34, 0
    %v82 = vsel %vm47, %v35, 0
    %v85 = vsel %vm47, %v36, 0
    %v88 = vsel %vm47, %v37, 0
    %v91 = vsel %vm47, %v38, 0
    %v94 = vsel %vm47, %v39, 0
    %v97 = vsel %vm47, %v40, 0
    %99 = vmatpush.xpose.msra.mxu0 %v97
    %100 = vmatpush.xpose.msra.mxu0 %v94
    %101 = vmatpush.xpose.msra.mxu0 %v91
    %102 = vmatpush.xpose.msra.mxu0 %v88
    %103 = vmatpush.xpose.msra.mxu0 %v85
    %104 = vmatpush.xpose.msra.mxu0 %v82
    %105 = vmatpush.xpose.msra.mxu0 %v79
    %106 = vmatpush.xpose.msra.mxu0 %v76
    %107 = vmatpush.xpose.msra.mxu0 %v73
    %108 = vmatpush.xpose.msra.mxu0 %v70
    %109 = vmatpush.xpose.msra.mxu0 %v67
    %110 = vmatpush.xpose.msra.mxu0 %v64
    %111 = vmatpush.xpose.msra.mxu0 %v61
    %112 = vmatpush.xpose.msra.mxu0 %v58
    %113 = vmatpush.xpose.msra.mxu0 %v55
    %114 = vmatpush.xpose.msra.mxu0 %v52
    %115 = vmatmul.f32.gmra.mxu0 %v49
    %v116 = vpop.f32.mrf.mxu0
    %v117 = vadd.f32 %v45, %v116
    %118 = vdwg.mxu0
    %v119 = vxor.u32 %v117, 2147483648
    %v120 = vmul.f32 %v119, 1.442695
    %v121 = vpow.pop %v120
    %v122 = vadd.f32 %v121, 1.0
    %v123 = vrcp.pop %v122
    %v124 = vmul.f32 %v122, %v123
    %v125 = vsub.f32 1.0, %v124
    %v126 = vmul.f32 %v123, %v125
    %v127 = vadd.f32 %v123, %v126
    %vm128 = vweird.f32 %v122
    %vm129 = vweird.f32 %v123
    %vm130 = vmor %vm128, %vm129
    %v131 = vsel %vm130, %v123, %v127
    %v132 = vand.u32 2147483647, %v122
    %vm133 = vcmp.eq.f32.partialorder %v132, 8.507059e+37
    %v134 = vand.u32 %v122, 2147483648
    %v135 = vor.u32 1.1754944e-38, %v134
    %v136 = vsel %vm133, %v135, %v131
    %v137 = vmul.f32 1.0, %v136
    %v138 = vld [vmem:[%s3] sm:$0xff]
    %v139 = vld [vmem:[%s3 + $0x8] sm:$0xff]
    %v140 = vld [vmem:[%s3 + $0x10] sm:$0xff]
    %v141 = vld [vmem:[%s4] sm:$0xff]
    %v142 = vld [vmem:[%s4 + $0x8] sm:$0xff]
    %v143 = vld [vmem:[%s4 + $0x10] sm:$0xff]
    %145 = vset.pattern.permute.xlu0 0
    %146 = vperm.xlu0 %145, %v141
    %v147 = vpop.permute.xlu0 %146
    %150 = vset.pattern.permute.xlu0 0
    %151 = vperm.xlu0 %150, %v142
    %v152 = vpop.permute.xlu0 %151
    %155 = vset.pattern.permute.xlu0 0
    %156 = vperm.xlu0 %155, %v143
    %v157 = vpop.permute.xlu0 %156
    %vm159 = vcmask 64512
    %v161 = vsel %vm159, %v138, 0
    %v164 = vsel %vm159, %v139, 0
    %v167 = vsel %vm159, %v140, 0
    %169 = vmatpush.msra.mxu0 0.0
    %170 = vmatpush.msra.mxu0 0.0
    %171 = vmatpush.msra.mxu0 0.0
    %172 = vmatpush.msra.mxu0 0.0
    %173 = vmatpush.msra.mxu0 0.0
    %174 = vmatpush.msra.mxu0 0.0
    %175 = vmatpush.msra.mxu0 0.0
    %176 = vmatpush.msra.mxu0 0.0
    %177 = vmatpush.msra.mxu0 0.0
    %178 = vmatpush.msra.mxu0 0.0
    %179 = vmatpush.msra.mxu0 0.0
    %180 = vmatpush.msra.mxu0 0.0
    %181 = vmatpush.msra.mxu0 0.0
    %182 = vmatpush.msra.mxu0 0.0
    %183 = vmatpush.msra.mxu0 0.0
    %184 = vmatpush.msra.mxu0 %v137
    %185 = vmatmul.f32.gmra.mxu0 %v161
    %v186 = vpop.f32.mrf.mxu0
    %v187 = vadd.f32 %v147, %v186
    %188 = vmatmul.f32.gmra.mxu0 %v164
    %v189 = vpop.f32.mrf.mxu0
    %v190 = vadd.f32 %v152, %v189
    %191 = vmatmul.f32.gmra.mxu0 %v167
    %v192 = vpop.f32.mrf.mxu0
    %v193 = vadd.f32 %v157, %v192
    %194 = vdwg.mxu0
    %v195 = vmul.f32 %v187, %v190
    %v196 = vmul.f32 %v195, %v193
    %v197 = vld [vmem:[%s5] sm:$0xf]
    %v199 = vsel %vm159, %v197, 0
    %201 = vmatpush.msra.mxu0 0.0
    %202 = vmatpush.msra.mxu0 0.0
    %203 = vmatpush.msra.mxu0 0.0
    %204 = vmatpush.msra.mxu0 0.0
    %205 = vmatpush.msra.mxu0 0.0
    %206 = vmatpush.msra.mxu0 0.0
    %207 = vmatpush.msra.mxu0 0.0
    %208 = vmatpush.msra.mxu0 0.0
    %209 = vmatpush.msra.mxu0 0.0
    %210 = vmatpush.msra.mxu0 0.0
    %211 = vmatpush.msra.mxu0 0.0
    %212 = vmatpush.msra.mxu0 0.0
    %213 = vmatpush.msra.mxu0 0.0
    %214 = vmatpush.msra.mxu0 0.0
    %215 = vmatpush.msra.mxu0 0.0
    %216 = vmatpush.msra.mxu0 %v196
    %217 = vmatmul.f32.gmra.mxu0 %v199
    %v218 = vpop.f32.mrf.mxu0
    %v219 = vadd.f32 0.0, %v218
    %220 = vdwg.mxu0
    %221 = vst [vmem:[#allocation2] sm:$0xf] %v219
    // Predicated region
    $region26: #{tpu_custom_call.1} parent=1 // pred_check
      _
    $region27: #{tpu_custom_call.1} parent=1 // pred_check_branch
      %223 = sbr.rel (0) target = $region29
    $region28: #{tpu_custom_call.1} parent=1 // pred_region
      %225 = vsyncadd [#allocation3], 0
      %s227 = sshll.u32 [#allocation2], 4
      %s228 = int_to_ptr.vmem [resolvable:$true] %s227
      %s229 = sshll.u32 %s6, 4
      %s230 = int_to_ptr.hbm [resolvable:$true] %s229
      %232 = dma.vmem_to_hbm [thread:$0]  %s228, 64, %s230, [#allocation3]
    $region29: #{tpu_custom_call.1} parent=1 // pred_fallthru
      _
    // Predicated region
    $region30: #{tpu_custom_call.1} parent=1 // pred_check
      _
    $region31: #{tpu_custom_call.1} parent=1 // pred_check_branch
      %234 = sbr.rel (0) target = $region33
    $region32: #{tpu_custom_call.1} parent=1 // pred_region
      %236 = dma.done [#allocation3], 64
    $region33: #{tpu_custom_call.1} parent=1 // pred_fallthru
      _
    %237 = vsyncpa [#allocation3], 1

</llo_original>
